<compile_context>
chip_gen: v7x
topology: tpu7x:2x2x1
jax: 0.10.0
libtpu: 0.0.40
codegen_flags: <defaults>
</compile_context>

<pallas_src>
import jax
import jax.numpy as jnp
from jax.experimental import pallas as pl
from jax.experimental.pallas import tpu as pltpu

LANE = 128  # TPU lane width; feature dim and node count padded to multiples


# ---------------------------------------------------------------------------
# Per-layer kernel body (grid axis = layer index, h resident in VMEM scratch)
# ---------------------------------------------------------------------------
def _layer_kernel(h0_ref, a_ref, ws_ref, wn_ref, b_ref, out_ref, h_ref):
    """One SAGEConv(mean) layer per grid step.

    h0_ref : (Mp, Dp)     f32   gathered + padded input features (resident)
    a_ref  : (1, Mp, Mp)  bf16  this layer's row-normalized dense adjacency
    ws_ref : (1, Dp, Dp)  bf16  this layer's self weight (padded)
    wn_ref : (1, Dp, Dp)  bf16  this layer's neighbor weight (padded)
    b_ref  : (1, 1, Dp)   f32   this layer's neighbor bias (padded)
    out_ref: (Mp, Dp)     f32   final-layer output (written on last step)
    h_ref  : (Mp, Dp)     f32   persistent activation scratch
    """
    l = pl.program_id(0)
    last = pl.num_programs(0) - 1

    @pl.when(l == 0)
    def _():
        h_ref[...] = h0_ref[...]

    h_bf = h_ref[...].astype(jnp.bfloat16)
    # mean neighbor aggregation (MXU, f32 accumulation)
    neigh = jnp.dot(a_ref[0], h_bf, preferred_element_type=jnp.float32)
    # two accumulating matmuls instead of concat + single K=2*Dp matmul
    out = (jnp.dot(h_bf, ws_ref[0], preferred_element_type=jnp.float32)
           + jnp.dot(neigh.astype(jnp.bfloat16), wn_ref[0],
                     preferred_element_type=jnp.float32)
           + b_ref[0])                                            # f32 epilogue

    @pl.when(l != last)
    def _():
        h_ref[...] = jnp.maximum(out, 0.0)   # ReLU; dropout == identity (eval)

    @pl.when(l == last)
    def _():
        out_ref[...] = out


def fused_get_repr(h0_pad, a_stack, ws_stack, wn_stack, b_stack):
    """One pallas_call, gridded over layers."""
    num_layers, m_pad, _ = a_stack.shape
    d_pad = h0_pad.shape[1]

    # advisory cost estimate for XLA's scheduler
    flops = 2 * num_layers * (m_pad * m_pad * d_pad + 2 * m_pad * d_pad * d_pad)
    bytes_accessed = (a_stack.size * 2 + ws_stack.size * 2 + wn_stack.size * 2
                      + b_stack.size * 4 + 2 * m_pad * d_pad * 4)

    # VMEM budget: double-buffered gridded inputs + resident h0/out/h scratch
    vmem_bytes = (2 * m_pad * m_pad * 2          # A block (x2 buffers, bf16)
                  + 2 * 2 * d_pad * d_pad * 2    # W_self + W_neigh (x2, bf16)
                  + 2 * 1 * d_pad * 4            # bias (x2, f32)
                  + 3 * m_pad * d_pad * 4)       # h0 + out + h scratch (f32)
    vmem_limit = min(max(int(vmem_bytes * 1.5) + (4 << 20), 16 << 20), 100 << 20)

    return pl.pallas_call(
        _layer_kernel,
        out_shape=jax.ShapeDtypeStruct((m_pad, d_pad), jnp.float32),
        grid_spec=pltpu.PrefetchScalarGridSpec(
            num_scalar_prefetch=0,
            grid=(num_layers,),
            in_specs=[
                pl.BlockSpec((m_pad, d_pad), lambda l: (0, 0)),      # h0 (resident)
                pl.BlockSpec((1, m_pad, m_pad), lambda l: (l, 0, 0)),  # A[l]
                pl.BlockSpec((1, d_pad, d_pad), lambda l: (l, 0, 0)),  # W_self[l]
                pl.BlockSpec((1, d_pad, d_pad), lambda l: (l, 0, 0)),  # W_neigh[l]
                pl.BlockSpec((1, 1, d_pad), lambda l: (l, 0, 0)),      # b[l]
            ],
            out_specs=pl.BlockSpec((m_pad, d_pad), lambda l: (0, 0)),  # resident out
            scratch_shapes=[pltpu.VMEM((m_pad, d_pad), jnp.float32)],  # persistent h
        ),
        compiler_params=pltpu.CompilerParams(
            dimension_semantics=("arbitrary",),
            vmem_limit_bytes=vmem_limit,
        ),
        cost_estimate=pl.CostEstimate(
            flops=flops, transcendentals=0, bytes_accessed=bytes_accessed),
    )(h0_pad, a_stack, ws_stack, wn_stack, b_stack)


# ---------------------------------------------------------------------------
# PinSAGEModel (forward pass only)
# ---------------------------------------------------------------------------
class PinSAGEModelPallas:
    def __init__(self, node_features, hidden_dim, out_dim, num_layers, key):
        self.node_features = node_features      # (N, hidden_dim)
        self.hidden_dim = hidden_dim
        self.out_dim = out_dim
        self.num_layers = num_layers
        # pad the feature dim only up to 128 lanes (do NOT over-pad small dims)
        self.d_pad = pl.cdiv(max(hidden_dim, out_dim), LANE) * LANE

        layer_io = [(hidden_dim, hidden_dim)] * (num_layers - 1) + [(hidden_dim, out_dim)]
        self.params = []                         # raw f32 params (for the reference)
        ws_stack = jnp.zeros((num_layers, self.d_pad, self.d_pad), jnp.float32)
        wn_stack = jnp.zeros((num_layers, self.d_pad, self.d_pad), jnp.float32)
        b_stack = jnp.zeros((num_layers, 1, self.d_pad), jnp.float32)
        for li, (din, dout) in enumerate(layer_io):
            key, k1, k2, k3 = jax.random.split(key, 4)
            scale = 1.0 / jnp.sqrt(jnp.float32(din))
            w_self = jax.random.normal(k1, (din, dout), jnp.float32) * scale
            w_neigh = jax.random.normal(k2, (din, dout), jnp.float32) * scale
            b_neigh = jax.random.normal(k3, (dout,), jnp.float32) * 0.01
            self.params.append((w_self, w_neigh, b_neigh))
            ws_stack = ws_stack.at[li, :din, :dout].set(w_self)
            wn_stack = wn_stack.at[li, :din, :dout].set(w_neigh)
            b_stack = b_stack.at[li, 0, :dout].set(b_neigh)
        self.ws_stack = ws_stack.astype(jnp.bfloat16)  # MXU operand dtype
        self.wn_stack = wn_stack.astype(jnp.bfloat16)
        self.b_stack = b_stack                         # f32 epilogue

    def get_repr(self, blocks, input_node_ids):
        m = input_node_ids.shape[0]
        m_pad = pl.cdiv(m, LANE) * LANE
        # embedding gather + lane/sublane zero padding (host glue, stays in JAX)
        h0 = self.node_features[input_node_ids]                       # (M, hidden)
        h0 = jnp.pad(h0, ((0, m_pad - m), (0, self.d_pad - h0.shape[1])))
        a = jnp.stack(blocks)                                         # (L, M, M) f32
        a = jnp.pad(a, ((0, 0), (0, m_pad - m), (0, m_pad - m)))
        a = a.astype(jnp.bfloat16)
        emb_pad = fused_get_repr(h0, a, self.ws_stack, self.wn_stack, self.b_stack)
        return emb_pad[:m, :self.out_dim]                             # (M, out_dim)

    def forward(self, pos_src_idx, pos_dst_idx, neg_src_idx, neg_dst_idx,
                blocks, input_node_ids):
        m = input_node_ids.shape[0]
        # padded rows hold garbage; indices must address real rows only
        for idx in (pos_src_idx, pos_dst_idx, neg_src_idx, neg_dst_idx):
            assert int(jnp.max(idx)) < m
        emb = self.get_repr(blocks, input_node_ids)
        return emb[pos_src_idx], emb[pos_dst_idx], emb[neg_src_idx], emb[neg_dst_idx]


# ---------------------------------------------------------------------------
# Pure-JAX reference (same bf16-operand / f32-accumulation math) for checking
# ---------------------------------------------------------------------------
def reference_forward(model, pos_src, pos_dst, neg_src, neg_dst, blocks, input_ids):
    h = model.node_features[input_ids]
    n_layers = len(model.params)
    for i, (A, (w_self, w_neigh, b)) in enumerate(zip(blocks, model.params)):
        a_bf = A.astype(jnp.bfloat16)
        h_bf = h.astype(jnp.bfloat16)
        neigh = jnp.dot(a_bf, h_bf, preferred_element_type=jnp.float32)
        out = (jnp.dot(h_bf, w_self.astype(jnp.bfloat16),
                       preferred_element_type=jnp.float32)
               + jnp.dot(neigh.astype(jnp.bfloat16), w_neigh.astype(jnp.bfloat16),
                         preferred_element_type=jnp.float32)
               + b)
        if i != n_layers - 1:
            out = jnp.maximum(out, 0.0)
        h = out
    return h[pos_src], h[pos_dst], h[neg_src], h[neg_dst]


# ---------------------------------------------------------------------------
if __name__ == "__main__":
    key = jax.random.PRNGKey(0)

    # small synthetic problem
    num_nodes   = 64
    hidden_dim  = 32
    out_dim     = 16
    num_layers  = 3
    num_input   = 16          # |input_node_ids| = src = dst set of every block
    num_pos     = 8
    num_neg     = 8

    key, kf, kid, kadj, kpos, kneg = jax.random.split(key, 6)

    node_features = jax.random.normal(kf, (num_nodes, hidden_dim), jnp.float32)
    input_node_ids = jax.random.permutation(kid, num_nodes)[:num_input]

    # blocks: dense row-normalized adjacency matrices (num_input x num_input)
    blocks = []
    kb = kadj
    for _ in range(num_layers):
        kb, ksub = jax.random.split(kb)
        adj = (jax.random.uniform(ksub, (num_input, num_input)) < 0.3).astype(jnp.float32)
        deg = jnp.maximum(adj.sum(axis=1, keepdims=True), 1.0)   # zero-degree clamp
        blocks.append(adj / deg)

    # pos / neg edge endpoints, already mapped into [0, num_input)
    pos_src = jax.random.randint(kpos, (num_pos,), 0, num_input)
    pos_dst = jax.random.randint(jax.random.fold_in(kpos, 1), (num_pos,), 0, num_input)
    neg_src = jax.random.randint(kneg, (num_neg,), 0, num_input)
    neg_dst = jax.random.randint(jax.random.fold_in(kneg, 1), (num_neg,), 0, num_input)

    key, kparams = jax.random.split(key)
    model = PinSAGEModelPallas(node_features, hidden_dim, out_dim, num_layers, kparams)

    outs = model.forward(pos_src, pos_dst, neg_src, neg_dst, blocks, input_node_ids)
    outs = jax.block_until_ready(outs)

    # correctness vs pure-JAX reference (same bf16-operand math)
    refs = reference_forward(model, pos_src, pos_dst, neg_src, neg_dst,
                             blocks, input_node_ids)
    for o, r in zip(outs, refs):
        assert o.shape == r.shape and o.dtype == jnp.float32
        assert jnp.allclose(o, r, atol=1e-3, rtol=1e-3)

    print("KERNEL_OK")
</pallas_src>

<mosaic_0001>
module attributes {stable_mosaic.version = 11 : i64} {
  func.func @_layer_kernel(%arg0: i32, %arg1: memref<128x128xf32, #tpu.memory_space<vmem>>, %arg2: memref<1x128x128xbf16, #tpu.memory_space<vmem>>, %arg3: memref<1x128x128xbf16, #tpu.memory_space<vmem>>, %arg4: memref<1x128x128xbf16, #tpu.memory_space<vmem>>, %arg5: memref<1x1x128xf32, #tpu.memory_space<vmem>>, %arg6: memref<128x128xf32, #tpu.memory_space<vmem>>, %arg7: memref<128x128xf32, #tpu.memory_space<vmem>>) attributes {dimension_semantics = [#tpu.dimension_semantics<arbitrary>], iteration_bounds = array<i64: 3>, scalar_prefetch = 0 : i64, scratch_operands = 1 : i64, tpu.core_type = #tpu.core_type<tc>, window_params = [{pipeline_mode = #tpu.pipeline_mode<synchronous>, transform_indices = @transform_0, window_bounds = array<i64: 128, 128>}, {transform_indices = @transform_1, window_bounds = array<i64: 1, 128, 128>}, {transform_indices = @transform_2, window_bounds = array<i64: 1, 128, 128>}, {transform_indices = @transform_3, window_bounds = array<i64: 1, 128, 128>}, {transform_indices = @transform_4, window_bounds = array<i64: 1, 1, 128>}, {pipeline_mode = #tpu.pipeline_mode<synchronous>, transform_indices = @transform_5, window_bounds = array<i64: 128, 128>}]} {
    %c0_i32 = arith.constant 0 : i32
    %0 = arith.cmpi eq, %arg0, %c0_i32 : i32
    %1 = arith.extui %0 : i1 to i32
    %c0_i32_0 = arith.constant 0 : i32
    %2 = arith.cmpi ne, %1, %c0_i32_0 : i32
    scf.if %2 {
      %c0_19 = arith.constant 0 : index
      %c0_20 = arith.constant 0 : index
      %26 = vector.load %arg1[%c0_19, %c0_20] : memref<128x128xf32, #tpu.memory_space<vmem>>, vector<128x128xf32>
      %c0_21 = arith.constant 0 : index
      %c0_22 = arith.constant 0 : index
      %27 = vector.load %arg7[%c0_21, %c0_22] : memref<128x128xf32, #tpu.memory_space<vmem>>, vector<128x128xf32>
      tpu.vector_store %arg7[%c0_21, %c0_22], %26 {strides = array<i32>} : memref<128x128xf32, #tpu.memory_space<vmem>>, vector<128x128xf32>,
    } else {
    }
    %c0 = arith.constant 0 : index
    %c0_1 = arith.constant 0 : index
    %3 = vector.load %arg7[%c0, %c0_1] : memref<128x128xf32, #tpu.memory_space<vmem>>, vector<128x128xf32>
    %4 = arith.truncf %3 : vector<128x128xf32> to vector<128x128xbf16>
    %c0_2 = arith.constant 0 : index
    %c0_3 = arith.constant 0 : index
    %c0_4 = arith.constant 0 : index
    %5 = vector.load %arg2[%c0_2, %c0_3, %c0_4] : memref<1x128x128xbf16, #tpu.memory_space<vmem>>, vector<1x128x128xbf16>
    %6 = vector.shape_cast %5 : vector<1x128x128xbf16> to vector<128x128xbf16>
    %cst = arith.constant dense<0.000000e+00> : vector<128x128xf32>
    %7 = tpu.matmul %6, %4, %cst {dimension_numbers = #tpu.dot_dimension_numbers<[1], [0], [0], [1], [0, 0, 1, 1], [], []>} : vector<128x128xbf16>, vector<128x128xbf16>, vector<128x128xf32> -> vector<128x128xf32>
    %c0_5 = arith.constant 0 : index
    %c0_6 = arith.constant 0 : index
    %c0_7 = arith.constant 0 : index
    %8 = vector.load %arg3[%c0_5, %c0_6, %c0_7] : memref<1x128x128xbf16, #tpu.memory_space<vmem>>, vector<1x128x128xbf16>
    %9 = vector.shape_cast %8 : vector<1x128x128xbf16> to vector<128x128xbf16>
    %cst_8 = arith.constant dense<0.000000e+00> : vector<128x128xf32>
    %10 = tpu.matmul %4, %9, %cst_8 {dimension_numbers = #tpu.dot_dimension_numbers<[1], [0], [0], [1], [0, 0, 1, 1], [], []>} : vector<128x128xbf16>, vector<128x128xbf16>, vector<128x128xf32> -> vector<128x128xf32>
    %11 = arith.truncf %7 : vector<128x128xf32> to vector<128x128xbf16>
    %c0_9 = arith.constant 0 : index
    %c0_10 = arith.constant 0 : index
    %c0_11 = arith.constant 0 : index
    %12 = vector.load %arg4[%c0_9, %c0_10, %c0_11] : memref<1x128x128xbf16, #tpu.memory_space<vmem>>, vector<1x128x128xbf16>
    %13 = vector.shape_cast %12 : vector<1x128x128xbf16> to vector<128x128xbf16>
    %cst_12 = arith.constant dense<0.000000e+00> : vector<128x128xf32>
    %14 = tpu.matmul %11, %13, %cst_12 {dimension_numbers = #tpu.dot_dimension_numbers<[1], [0], [0], [1], [0, 0, 1, 1], [], []>} : vector<128x128xbf16>, vector<128x128xbf16>, vector<128x128xf32> -> vector<128x128xf32>
    %15 = arith.addf %10, %14 : vector<128x128xf32>
    %c0_13 = arith.constant 0 : index
    %c0_14 = arith.constant 0 : index
    %c0_15 = arith.constant 0 : index
    %16 = vector.load %arg5[%c0_13, %c0_14, %c0_15] : memref<1x1x128xf32, #tpu.memory_space<vmem>>, vector<1x1x128xf32>
    %17 = vector.shape_cast %16 : vector<1x1x128xf32> to vector<1x128xf32>
    %18 = vector.broadcast %17 : vector<1x128xf32> to vector<128x128xf32>
    %19 = arith.addf %15, %18 : vector<128x128xf32>
    %c2_i32 = arith.constant 2 : i32
    %20 = arith.cmpi ne, %arg0, %c2_i32 : i32
    %21 = arith.extui %20 : i1 to i32
    %c0_i32_16 = arith.constant 0 : i32
    %22 = arith.cmpi ne, %21, %c0_i32_16 : i32
    scf.if %22 {
      %cst_19 = arith.constant 0.000000e+00 : f32
      %26 = vector.broadcast %cst_19 : f32 to vector<128x128xf32>
      %27 = arith.maximumf %19, %26 : vector<128x128xf32>
      %c0_20 = arith.constant 0 : index
      %c0_21 = arith.constant 0 : index
      %28 = vector.load %arg7[%c0_20, %c0_21] : memref<128x128xf32, #tpu.memory_space<vmem>>, vector<128x128xf32>
      tpu.vector_store %arg7[%c0_20, %c0_21], %27 {strides = array<i32>} : memref<128x128xf32, #tpu.memory_space<vmem>>, vector<128x128xf32>,
    } else {
    }
    %c2_i32_17 = arith.constant 2 : i32
    %23 = arith.cmpi eq, %arg0, %c2_i32_17 : i32
    %24 = arith.extui %23 : i1 to i32
    %c0_i32_18 = arith.constant 0 : i32
    %25 = arith.cmpi ne, %24, %c0_i32_18 : i32
    scf.if %25 {
      %c0_19 = arith.constant 0 : index
      %c0_20 = arith.constant 0 : index
      %26 = vector.load %arg6[%c0_19, %c0_20] : memref<128x128xf32, #tpu.memory_space<vmem>>, vector<128x128xf32>
      tpu.vector_store %arg6[%c0_19, %c0_20], %19 {strides = array<i32>} : memref<128x128xf32, #tpu.memory_space<vmem>>, vector<128x128xf32>,
    } else {
    }
    return
  }
  func.func @transform_0(%arg0: i32) -> (i32, i32) {
    %c0_i32 = arith.constant 0 : i32
    %c0_i32_0 = arith.constant 0 : i32
    %c0_i32_1 = arith.constant 0 : i32
    return %c0_i32, %c0_i32_0 : i32, i32
  }
  func.func @transform_1(%arg0: i32) -> (i32, i32, i32) {
    %c0_i32 = arith.constant 0 : i32
    %c0_i32_0 = arith.constant 0 : i32
    %c0_i32_1 = arith.constant 0 : i32
    return %arg0, %c0_i32, %c0_i32_0 : i32, i32, i32
  }
  func.func @transform_2(%arg0: i32) -> (i32, i32, i32) {
    %c0_i32 = arith.constant 0 : i32
    %c0_i32_0 = arith.constant 0 : i32
    %c0_i32_1 = arith.constant 0 : i32
    return %arg0, %c0_i32, %c0_i32_0 : i32, i32, i32
  }
  func.func @transform_3(%arg0: i32) -> (i32, i32, i32) {
    %c0_i32 = arith.constant 0 : i32
    %c0_i32_0 = arith.constant 0 : i32
    %c0_i32_1 = arith.constant 0 : i32
    return %arg0, %c0_i32, %c0_i32_0 : i32, i32, i32
  }
  func.func @transform_4(%arg0: i32) -> (i32, i32, i32) {
    %c0_i32 = arith.constant 0 : i32
    %c0_i32_0 = arith.constant 0 : i32
    %c0_i32_1 = arith.constant 0 : i32
    return %arg0, %c0_i32, %c0_i32_0 : i32, i32, i32
  }
  func.func @transform_5(%arg0: i32) -> (i32, i32) {
    %c0_i32 = arith.constant 0 : i32
    %c0_i32_0 = arith.constant 0 : i32
    %c0_i32_1 = arith.constant 0 : i32
    return %c0_i32, %c0_i32_0 : i32, i32
  }
}

</mosaic_0001>

<llo_original>
// kernel: tpu_custom_call.1
$region0: #{tpu_custom_call.1}
  #allocation0 [shape = 'u32[]', space=smem, size = 0x4, offset = 0x4, fixed_abs, tag = 'smem constant byte address 0x4 - core index']
  #allocation1 [shape = 'u32[144,128]{1,0:T(1,128)}', space=vmem, size = 0x12000, scoped, tag = 'internal scratch']
  #allocation2 [shape = 'f32[128,128]{1,0:T(8,128)}', space=vmem, size = 0x10000, scoped, tag = 'scratch operand']
  %s0 = inlined_call_operand.hbm [shape: f32[128,128], index: 0, kind: input, shape index: {}]
  %s1 = inlined_call_operand.hbm [shape: bf16[3,128,128], index: 1, kind: input, shape index: {}]
  %s2 = inlined_call_operand.hbm [shape: bf16[3,128,128], index: 2, kind: input, shape index: {}]
  %s3 = inlined_call_operand.hbm [shape: bf16[3,128,128], index: 3, kind: input, shape index: {}]
  %s4 = inlined_call_operand.vmem [shape: f32[3,1,128], index: 4, kind: input, shape index: {}]
  %s5 = inlined_call_operand.hbm [shape: f32[128,128], index: 5, kind: output, shape index: {}]
  %s6 = sld [smem:[#allocation0]]
  $region81: #{tpu_custom_call.1} parent=0
    _
  %s8 = ssub.s32 1, %s6
  %s9 = scalar_select 0, %s8, %s6
  $region1: #{tpu_custom_call.1} parent=0
    #allocation3 [shape = 'u8[65536]{0}', space=vmem, size = 0x10000, scoped, tag = 'input window, operand 0, single buffered']
    #allocation4 [shape = 's32[2]{0}', space=sflag, size = 0x8, scoped, tag = 'scoped memory for tpu_custom_call.1']
    #allocation5 [shape = 's32[2]{0}', space=sflag, size = 0x8, scoped, tag = 'scoped memory for tpu_custom_call.1']
    #allocation6 [shape = 'u8[65536]{0}', space=vmem, size = 0x10000, scoped, tag = 'input window, operand 1']
    #allocation7 [shape = 's32[2]{0}', space=sflag, size = 0x8, scoped, tag = 'scoped memory for tpu_custom_call.1']
    #allocation8 [shape = 'u8[65536]{0}', space=vmem, size = 0x10000, scoped, tag = 'input window, operand 2']
    #allocation9 [shape = 'u8[65536]{0}', space=vmem, size = 0x10000, scoped, tag = 'input window, operand 3']
    #allocation10 [shape = 's32[2]{0}', space=sflag, size = 0x8, scoped, tag = 'scoped memory for tpu_custom_call.1']
    #allocation11 [shape = 'u8[65536]{0}', space=vmem, size = 0x10000, scoped, tag = 'output window, operand 0, single buffered']
    %10 = vsyncpa [#allocation4], 0
    %11 = vsyncpa [#allocation7], 0
    %s12 = scalar_lea.sflag [#allocation7], 1
    %13 = vsyncpa %s12, 0
    %14 = vsyncpa [#allocation10], 0
    %s15 = scalar_lea.sflag [#allocation10], 1
    %16 = vsyncpa %s15, 0
    %17 = vsyncpa [#allocation5], 0
    loop: start=0, step=1, limit=5
    $region2: #{tpu_custom_call.1} parent=1 // loop_pre_header
      _
    $region3: #{tpu_custom_call.1} parent=1 // loop_header
      %s19 = sphi 0, %s23
      %p20 = scmp.ge.s32.totalorder %s19, 5
      %s27 = sphi 0, %s27
      %s29 = sphi 0, %s27
      %s30 = sphi 0, %s29
      %s44 = sphi 0, %s30
      %s50 = sphi 0, %s52
      %s53 = sphi 0, %s50
      %s54 = sphi 0, %s53
      %s70 = sphi 0, %s54
      %s76 = sphi 0, %s78
      %s79 = sphi 0, %s76
      %s80 = sphi 0, %s79
      %s96 = sphi 0, %s80
      %s102 = sphi 0, %s104
      %s105 = sphi 0, %s102
      %s106 = sphi 0, %s105
      %s122 = sphi 0, %s106
      %s128 = sphi 0, %s130
      %s131 = sphi 0, %s128
      %s132 = sphi 0, %s131
      %s148 = sphi 0, %s132
      %s152 = sphi 0, %s152
      %s154 = sphi 0, %s152
      %s155 = sphi 0, %s154
      %s169 = sphi 0, %s155
    $region4: #{tpu_custom_call.1} parent=1 // loop_header_branch
      %22 = sbr.rel (%p20) target = $region8
    $region5: #{tpu_custom_call.1} parent=1 // loop_body
      %s24 = ssub.s32 %s19, 1
      %s25 = ssub.s32 %s19, 2
      %s26 = sadd.s32 %s19, 1
      %s28 = sadd.s32 %s27, 1
      %p31 = scmp.eq.s32.totalorder %s19, 2
      %p32 = scmp.ne.s32.totalorder %s27, %s29
      %p33 = scmp.eq.s32.totalorder %s19, 0
      %p34 = por %p32, %p33
      %p35 = scmp.ne.s32.totalorder %s27, %s29
      %p36 = scmp.eq.s32.totalorder %s24, 2
      %p37 = por %p35, %p36
      %p38 = scmp.ne.s32.totalorder %s29, %s30
      %p39 = scmp.eq.s32.totalorder %s24, 0
      %p40 = por %p38, %p39
      %p41 = scmp.ne.s32.totalorder %s29, %s30
      %p42 = scmp.eq.s32.totalorder %s25, 2
      %p43 = por %p41, %p42
      %p45 = scmp.ne.s32.totalorder %s30, %s44
      %p46 = scmp.eq.s32.totalorder %s25, 0
      %p47 = por %p45, %p46
      %s48 = ssub.s32 %s19, %s26
      %p49 = scmp.eq.s32.totalorder %s48, 0
      %s51 = sadd.s32 %s50, 1
      %s52 = scalar_select %p49, %s50, %s51
      %p55 = pneg %p49
      %p56 = scmp.eq.s32.totalorder %s19, 2
      %p57 = por %p55, %p56
      %p58 = scmp.ne.s32.totalorder %s50, %s53
      %p59 = scmp.eq.s32.totalorder %s19, 0
      %p60 = por %p58, %p59
      %p61 = scmp.ne.s32.totalorder %s50, %s53
      %p62 = scmp.eq.s32.totalorder %s24, 2
      %p63 = por %p61, %p62
      %p64 = scmp.ne.s32.totalorder %s53, %s54
      %p65 = scmp.eq.s32.totalorder %s24, 0
      %p66 = por %p64, %p65
      %p67 = scmp.ne.s32.totalorder %s53, %s54
      %p68 = scmp.eq.s32.totalorder %s25, 2
      %p69 = por %p67, %p68
      %p71 = scmp.ne.s32.totalorder %s54, %s70
      %p72 = scmp.eq.s32.totalorder %s25, 0
      %p73 = por %p71, %p72
      %s74 = ssub.s32 %s19, %s26
      %p75 = scmp.eq.s32.totalorder %s74, 0
      %s77 = sadd.s32 %s76, 1
      %s78 = scalar_select %p75, %s76, %s77
      %p81 = pneg %p75
      %p82 = scmp.eq.s32.totalorder %s19, 2
      %p83 = por %p81, %p82
      %p84 = scmp.ne.s32.totalorder %s76, %s79
      %p85 = scmp.eq.s32.totalorder %s19, 0
      %p86 = por %p84, %p85
      %p87 = scmp.ne.s32.totalorder %s76, %s79
      %p88 = scmp.eq.s32.totalorder %s24, 2
      %p89 = por %p87, %p88
      %p90 = scmp.ne.s32.totalorder %s79, %s80
      %p91 = scmp.eq.s32.totalorder %s24, 0
      %p92 = por %p90, %p91
      %p93 = scmp.ne.s32.totalorder %s79, %s80
      %p94 = scmp.eq.s32.totalorder %s25, 2
      %p95 = por %p93, %p94
      %p97 = scmp.ne.s32.totalorder %s80, %s96
      %p98 = scmp.eq.s32.totalorder %s25, 0
      %p99 = por %p97, %p98
      %s100 = ssub.s32 %s19, %s26
      %p101 = scmp.eq.s32.totalorder %s100, 0
      %s103 = sadd.s32 %s102, 1
      %s104 = scalar_select %p101, %s102, %s103
      %p107 = pneg %p101
      %p108 = scmp.eq.s32.totalorder %s19, 2
      %p109 = por %p107, %p108
      %p110 = scmp.ne.s32.totalorder %s102, %s105
      %p111 = scmp.eq.s32.totalorder %s19, 0
      %p112 = por %p110, %p111
      %p113 = scmp.ne.s32.totalorder %s102, %s105
      %p114 = scmp.eq.s32.totalorder %s24, 2
      %p115 = por %p113, %p114
      %p116 = scmp.ne.s32.totalorder %s105, %s106
      %p117 = scmp.eq.s32.totalorder %s24, 0
      %p118 = por %p116, %p117
      %p119 = scmp.ne.s32.totalorder %s105, %s106
      %p120 = scmp.eq.s32.totalorder %s25, 2
      %p121 = por %p119, %p120
      %p123 = scmp.ne.s32.totalorder %s106, %s122
      %p124 = scmp.eq.s32.totalorder %s25, 0
      %p125 = por %p123, %p124
      %s126 = ssub.s32 %s19, %s26
      %p127 = scmp.eq.s32.totalorder %s126, 0
      %s129 = sadd.s32 %s128, 1
      %s130 = scalar_select %p127, %s128, %s129
      %p133 = pneg %p127
      %p134 = scmp.eq.s32.totalorder %s19, 2
      %p135 = por %p133, %p134
      %p136 = scmp.ne.s32.totalorder %s128, %s131
      %p137 = scmp.eq.s32.totalorder %s19, 0
      %p138 = por %p136, %p137
      %p139 = scmp.ne.s32.totalorder %s128, %s131
      %p140 = scmp.eq.s32.totalorder %s24, 2
      %p141 = por %p139, %p140
      %p142 = scmp.ne.s32.totalorder %s131, %s132
      %p143 = scmp.eq.s32.totalorder %s24, 0
      %p144 = por %p142, %p143
      %p145 = scmp.ne.s32.totalorder %s131, %s132
      %p146 = scmp.eq.s32.totalorder %s25, 2
      %p147 = por %p145, %p146
      %p149 = scmp.ne.s32.totalorder %s132, %s148
      %p150 = scmp.eq.s32.totalorder %s25, 0
      %p151 = por %p149, %p150
      %s153 = sadd.s32 %s152, 1
      %p156 = scmp.eq.s32.totalorder %s19, 2
      %p157 = scmp.ne.s32.totalorder %s152, %s154
      %p158 = scmp.eq.s32.totalorder %s19, 0
      %p159 = por %p157, %p158
      %p160 = scmp.ne.s32.totalorder %s152, %s154
      %p161 = scmp.eq.s32.totalorder %s24, 2
      %p162 = por %p160, %p161
      %p163 = scmp.ne.s32.totalorder %s154, %s155
      %p164 = scmp.eq.s32.totalorder %s24, 0
      %p165 = por %p163, %p164
      %p166 = scmp.ne.s32.totalorder %s154, %s155
      %p167 = scmp.eq.s32.totalorder %s25, 2
      %p168 = por %p166, %p167
      %p170 = scmp.ne.s32.totalorder %s155, %s169
      %p171 = scmp.eq.s32.totalorder %s25, 0
      %p172 = por %p170, %p171
      %p173 = scmp.le.s32.totalorder 1, %s19
      %p174 = scmp.lt.s32.totalorder %s19, 4
      %p175 = pnand %p173, %p174
      %p176 = pneg %p175
      // Predicated region
      $region9: #{tpu_custom_call.1} parent=5 // pred_check
        _
      $region10: #{tpu_custom_call.1} parent=5 // pred_check_branch
        %178 = sbr.rel (%p175) target = $region12
      $region11: #{tpu_custom_call.1} parent=5 // pred_region
        %s179 = ssub.s32 %s19, 1
        // Predicated region
        $region13: #{tpu_custom_call.1} parent=11 // pred_check
          %p180 = pneg %p40
        $region14: #{tpu_custom_call.1} parent=11 // pred_check_branch
          %182 = sbr.rel (%p180) target = $region16
        $region15: #{tpu_custom_call.1} parent=11 // pred_region
          %s184 = ssub.s32 2048, 2048
          %185 = vsyncadd [#allocation4], %s184
          %s186 = sshll.u32 [#allocation3], 4
          %s187 = int_to_ptr.vmem [resolvable:$true] %s186
          %192 = dma.hbm_to_vmem [thread:$0]  %s0, 2048, %s187, [#allocation4], 128, 128, 8
        $region16: #{tpu_custom_call.1} parent=11 // pred_fallthru
          _
      $region12: #{tpu_custom_call.1} parent=5 // pred_fallthru
        _
      %p193 = scmp.lt.s32.totalorder %s19, 3
      // Predicated region
      $region17: #{tpu_custom_call.1} parent=5 // pred_check
        %p194 = pneg %p193
      $region18: #{tpu_custom_call.1} parent=5 // pred_check_branch
        %196 = sbr.rel (%p194) target = $region20
      $region19: #{tpu_custom_call.1} parent=5 // pred_region
        // Predicated region
        $region21: #{tpu_custom_call.1} parent=19 // pred_check
          %p197 = pneg %p60
        $region22: #{tpu_custom_call.1} parent=19 // pred_check_branch
          %199 = sbr.rel (%p197) target = $region24
        $region23: #{tpu_custom_call.1} parent=19 // pred_region
          %s200 = sand.u32 %s19, 1
          %s201 = scalar_lea.sflag [#allocation7], %s200
          %s202 = sand.u32 %s50, 1
          %s203 = smul.addr %s202, 64
          %s204 = scalar_lea.vmem [#allocation6], %s203
          %s206 = ssub.s32 1024, 1024
          %207 = vsyncadd %s201, %s206
          %s208 = smul.addr %s19, 16
          %s209 = smul.addr %s208, 64
          %s210 = scalar_lea.hbm %s1, %s209
          %s211 = sshll.u32 %s204, 4
          %s212 = int_to_ptr.vmem [resolvable:$true] %s211
          %217 = dma.hbm_to_vmem [thread:$0]  %s210, 1024, %s212, %s201, 64, 64, 4
        $region24: #{tpu_custom_call.1} parent=19 // pred_fallthru
          _
        // Predicated region
        $region25: #{tpu_custom_call.1} parent=19 // pred_check
          %p218 = pneg %p86
        $region26: #{tpu_custom_call.1} parent=19 // pred_check_branch
          %220 = sbr.rel (%p218) target = $region28
        $region27: #{tpu_custom_call.1} parent=19 // pred_region
          %s221 = sand.u32 %s19, 1
          %s222 = scalar_lea.sflag [#allocation7], %s221
          %s223 = sand.u32 %s76, 1
          %s224 = smul.addr %s223, 64
          %s225 = scalar_lea.vmem [#allocation8], %s224
          %s227 = ssub.s32 1024, 1024
          %228 = vsyncadd %s222, %s227
          %s229 = smul.addr %s19, 16
          %s230 = smul.addr %s229, 64
          %s231 = scalar_lea.hbm %s2, %s230
          %s232 = sshll.u32 %s225, 4
          %s233 = int_to_ptr.vmem [resolvable:$true] %s232
          %238 = dma.hbm_to_vmem [thread:$0]  %s231, 1024, %s233, %s222, 64, 64, 4
        $region28: #{tpu_custom_call.1} parent=19 // pred_fallthru
          _
        // Predicated region
        $region29: #{tpu_custom_call.1} parent=19 // pred_check
          %p239 = pneg %p112
        $region30: #{tpu_custom_call.1} parent=19 // pred_check_branch
          %241 = sbr.rel (%p239) target = $region32
        $region31: #{tpu_custom_call.1} parent=19 // pred_region
          %s242 = sand.u32 %s102, 1
          %s243 = scalar_lea.sflag [#allocation10], %s242
          %s244 = sand.u32 %s102, 1
          %s245 = smul.addr %s244, 64
          %s246 = scalar_lea.vmem [#allocation9], %s245
          %s248 = ssub.s32 1024, 1024
          %249 = vsyncadd %s243, %s248
          %s250 = smul.addr %s19, 16
          %s251 = smul.addr %s250, 64
          %s252 = scalar_lea.hbm %s3, %s251
          %s253 = sshll.u32 %s246, 4
          %s254 = int_to_ptr.vmem [resolvable:$true] %s253
          %259 = dma.hbm_to_vmem [thread:$0]  %s252, 1024, %s254, %s243, 64, 64, 4
        $region32: #{tpu_custom_call.1} parent=19 // pred_fallthru
          _
        // Predicated region
        $region33: #{tpu_custom_call.1} parent=19 // pred_check
          %p260 = pneg %p138
        $region34: #{tpu_custom_call.1} parent=19 // pred_check_branch
          %262 = sbr.rel (%p260) target = $region36
        $region35: #{tpu_custom_call.1} parent=19 // pred_region
          %p263 = scmp.lt.s32.totalorder %s19, 2
          %s264 = scalar_select %p263, %s19, 2
          %s265 = scalar_lea.vmem %s4, %s264
        $region36: #{tpu_custom_call.1} parent=19 // pred_fallthru
          _
      $region20: #{tpu_custom_call.1} parent=5 // pred_fallthru
        _
      %p266 = scmp.le.s32.totalorder 1, %s19
      %p267 = scmp.lt.s32.totalorder %s19, 4
      %p268 = pnand %p266, %p267
      %p269 = pneg %p268
      // Predicated region
      $region37: #{tpu_custom_call.1} parent=5 // pred_check
        _
      $region38: #{tpu_custom_call.1} parent=5 // pred_check_branch
        %271 = sbr.rel (%p268) target = $region40
      $region39: #{tpu_custom_call.1} parent=5 // pred_region
        %s272 = ssub.s32 %s19, 1
        // Predicated region
        $region41: #{tpu_custom_call.1} parent=39 // pred_check
          %p273 = pneg %p40
        $region42: #{tpu_custom_call.1} parent=39 // pred_check_branch
          %275 = sbr.rel (%p273) target = $region44
        $region43: #{tpu_custom_call.1} parent=39 // pred_region
          %276 = dma.done [#allocation4], 2048
        $region44: #{tpu_custom_call.1} parent=39 // pred_fallthru
          _
        %s277 = sand.u32 %s24, 1
        %s278 = scalar_lea.sflag [#allocation7], %s277
        %s279 = sand.u32 %s53, 1
        %s280 = smul.addr %s279, 64
        %s281 = scalar_lea.vmem [#allocation6], %s280
        // Predicated region
        $region45: #{tpu_custom_call.1} parent=39 // pred_check
          %p282 = pneg %p66
        $region46: #{tpu_custom_call.1} parent=39 // pred_check_branch
          %284 = sbr.rel (%p282) target = $region48
        $region47: #{tpu_custom_call.1} parent=39 // pred_region
          %285 = dma.done %s278, 1024
        $region48: #{tpu_custom_call.1} parent=39 // pred_fallthru
          _
        %s286 = sand.u32 %s24, 1
        %s287 = scalar_lea.sflag [#allocation7], %s286
        %s288 = sand.u32 %s79, 1
        %s289 = smul.addr %s288, 64
        %s290 = scalar_lea.vmem [#allocation8], %s289
        // Predicated region
        $region49: #{tpu_custom_call.1} parent=39 // pred_check
          %p291 = pneg %p92
        $region50: #{tpu_custom_call.1} parent=39 // pred_check_branch
          %293 = sbr.rel (%p291) target = $region52
        $region51: #{tpu_custom_call.1} parent=39 // pred_region
          %294 = dma.done %s287, 1024
        $region52: #{tpu_custom_call.1} parent=39 // pred_fallthru
          _
        %s295 = sand.u32 %s105, 1
        %s296 = scalar_lea.sflag [#allocation10], %s295
        %s297 = sand.u32 %s105, 1
        %s298 = smul.addr %s297, 64
        %s299 = scalar_lea.vmem [#allocation9], %s298
        // Predicated region
        $region53: #{tpu_custom_call.1} parent=39 // pred_check
          %p300 = pneg %p118
        $region54: #{tpu_custom_call.1} parent=39 // pred_check_branch
          %302 = sbr.rel (%p300) target = $region56
        $region55: #{tpu_custom_call.1} parent=39 // pred_region
          %303 = dma.done %s296, 1024
        $region56: #{tpu_custom_call.1} parent=39 // pred_fallthru
          _
        %p304 = pneg %p40
        %p305 = pneg %p37
        %s306 = sand.u32 %s24, 1
        %s307 = scalar_lea.sflag [#allocation7], %s306
        %s308 = sand.u32 %s53, 1
        %s309 = smul.addr %s308, 64
        %s310 = scalar_lea.vmem [#allocation6], %s309
        %p311 = pneg %p66
        %p312 = pneg %p63
        %s313 = sand.u32 %s24, 1
        %s314 = scalar_lea.sflag [#allocation7], %s313
        %s315 = sand.u32 %s79, 1
        %s316 = smul.addr %s315, 64
        %s317 = scalar_lea.vmem [#allocation8], %s316
        %p318 = pneg %p92
        %p319 = pneg %p89
        %s320 = sand.u32 %s105, 1
        %s321 = scalar_lea.sflag [#allocation10], %s320
        %s322 = sand.u32 %s105, 1
        %s323 = smul.addr %s322, 64
        %s324 = scalar_lea.vmem [#allocation9], %s323
        %p325 = pneg %p118
        %p326 = pneg %p115
        %p327 = scmp.lt.s32.totalorder %s24, 2
        %s328 = scalar_select %p327, %s24, 2
        %s329 = scalar_lea.vmem %s4, %s328
        %p330 = pneg %p144
        %p331 = pneg %p141
        %p332 = pneg %p165
        %p333 = pneg %p162
        %p334 = scmp.lt.s32.totalorder %s24, 2
        %s335 = scalar_select %p334, %s24, 2
        %s336 = scalar_lea.vmem %s4, %s335
        %p338 = scmp.eq.s32.totalorder %s24, 0
        // Predicated region
        $region57: #{tpu_custom_call.1} parent=39 // pred_check
          %p339 = pneg %p338
        $region58: #{tpu_custom_call.1} parent=39 // pred_check_branch
          %341 = sbr.rel (%p339) target = $region60
        $region59: #{tpu_custom_call.1} parent=39 // pred_region
          %v342 = vld [vmem:[#allocation3] sm:$0xff]
          %v343 = vld [vmem:[#allocation3 + $0x8] sm:$0xff]
          %v344 = vld [vmem:[#allocation3 + $0x10] sm:$0xff]
          %v345 = vld [vmem:[#allocation3 + $0x18] sm:$0xff]
          %v346 = vld [vmem:[#allocation3 + $0x20] sm:$0xff]
          %v347 = vld [vmem:[#allocation3 + $0x28] sm:$0xff]
          %v348 = vld [vmem:[#allocation3 + $0x30] sm:$0xff]
          %v349 = vld [vmem:[#allocation3 + $0x38] sm:$0xff]
          %v350 = vld [vmem:[#allocation3 + $0x40] sm:$0xff]
          %v351 = vld [vmem:[#allocation3 + $0x48] sm:$0xff]
          %v352 = vld [vmem:[#allocation3 + $0x50] sm:$0xff]
          %v353 = vld [vmem:[#allocation3 + $0x58] sm:$0xff]
          %v354 = vld [vmem:[#allocation3 + $0x60] sm:$0xff]
          %v355 = vld [vmem:[#allocation3 + $0x68] sm:$0xff]
          %v356 = vld [vmem:[#allocation3 + $0x70] sm:$0xff]
          %v357 = vld [vmem:[#allocation3 + $0x78] sm:$0xff]
          %358 = vst [vmem:[#allocation2] sm:$0xff] %v342
          %359 = vst [vmem:[#allocation2 + $0x8] sm:$0xff] %v343
          %360 = vst [vmem:[#allocation2 + $0x10] sm:$0xff] %v344
          %361 = vst [vmem:[#allocation2 + $0x18] sm:$0xff] %v345
          %362 = vst [vmem:[#allocation2 + $0x20] sm:$0xff] %v346
          %363 = vst [vmem:[#allocation2 + $0x28] sm:$0xff] %v347
          %364 = vst [vmem:[#allocation2 + $0x30] sm:$0xff] %v348
          %365 = vst [vmem:[#allocation2 + $0x38] sm:$0xff] %v349
          %366 = vst [vmem:[#allocation2 + $0x40] sm:$0xff] %v350
          %367 = vst [vmem:[#allocation2 + $0x48] sm:$0xff] %v351
          %368 = vst [vmem:[#allocation2 + $0x50] sm:$0xff] %v352
          %369 = vst [vmem:[#allocation2 + $0x58] sm:$0xff] %v353
          %370 = vst [vmem:[#allocation2 + $0x60] sm:$0xff] %v354
          %371 = vst [vmem:[#allocation2 + $0x68] sm:$0xff] %v355
          %372 = vst [vmem:[#allocation2 + $0x70] sm:$0xff] %v356
          %373 = vst [vmem:[#allocation2 + $0x78] sm:$0xff] %v357
        $region60: #{tpu_custom_call.1} parent=39 // pred_fallthru
          _
        %v374 = vld [vmem:[#allocation2] sm:$0xff]
        %v375 = vld [vmem:[#allocation2 + $0x8] sm:$0xff]
        %v376 = vld [vmem:[#allocation2 + $0x10] sm:$0xff]
        %v377 = vld [vmem:[#allocation2 + $0x18] sm:$0xff]
        %v378 = vld [vmem:[#allocation2 + $0x20] sm:$0xff]
        %v379 = vld [vmem:[#allocation2 + $0x28] sm:$0xff]
        %v380 = vld [vmem:[#allocation2 + $0x30] sm:$0xff]
        %v381 = vld [vmem:[#allocation2 + $0x38] sm:$0xff]
        %v382 = vld [vmem:[#allocation2 + $0x40] sm:$0xff]
        %v383 = vld [vmem:[#allocation2 + $0x48] sm:$0xff]
        %v384 = vld [vmem:[#allocation2 + $0x50] sm:$0xff]
        %v385 = vld [vmem:[#allocation2 + $0x58] sm:$0xff]
        %v386 = vld [vmem:[#allocation2 + $0x60] sm:$0xff]
        %v387 = vld [vmem:[#allocation2 + $0x68] sm:$0xff]
        %v388 = vld [vmem:[#allocation2 + $0x70] sm:$0xff]
        %v389 = vld [vmem:[#allocation2 + $0x78] sm:$0xff]
        %v390 = vpack.c.bf16 %v375, %v374
        %v391 = vpack.c.bf16 %v377, %v376
        %v392 = vpack.c.bf16 %v379, %v378
        %v393 = vpack.c.bf16 %v381, %v380
        %v394 = vpack.c.bf16 %v383, %v382
        %v395 = vpack.c.bf16 %v385, %v384
        %v396 = vpack.c.bf16 %v387, %v386
        %v397 = vpack.c.bf16 %v389, %v388
        %v398 = vld [vmem:[%s281] sm:$0xf]
        %v399 = vld [vmem:[%s281 + $0x4] sm:$0xf]
        %v400 = vld [vmem:[%s281 + $0x8] sm:$0xf]
        %v401 = vld [vmem:[%s281 + $0xc] sm:$0xf]
        %v402 = vld [vmem:[%s281 + $0x10] sm:$0xf]
        %v403 = vld [vmem:[%s281 + $0x14] sm:$0xf]
        %v404 = vld [vmem:[%s281 + $0x18] sm:$0xf]
        %v405 = vld [vmem:[%s281 + $0x1c] sm:$0xf]
        %v406 = vld [vmem:[%s281 + $0x20] sm:$0xf]
        %v407 = vld [vmem:[%s281 + $0x24] sm:$0xf]
        %v408 = vld [vmem:[%s281 + $0x28] sm:$0xf]
        %v409 = vld [vmem:[%s281 + $0x2c] sm:$0xf]
        %v410 = vld [vmem:[%s281 + $0x30] sm:$0xf]
        %v411 = vld [vmem:[%s281 + $0x34] sm:$0xf]
        %v412 = vld [vmem:[%s281 + $0x38] sm:$0xf]
        %v413 = vld [vmem:[%s281 + $0x3c] sm:$0xf]
        %v430 = vunpack.c.l.b16 %v398
        %v431 = vunpack.c.l.b16 %v399
        %v432 = vunpack.c.l.b16 %v400
        %v433 = vunpack.c.l.b16 %v401
        %v434 = vunpack.c.l.b16 %v402
        %v435 = vunpack.c.l.b16 %v403
        %v436 = vunpack.c.l.b16 %v404
        %v437 = vunpack.c.l.b16 %v405
        %v438 = vunpack.c.l.b16 %v406
        %v439 = vunpack.c.l.b16 %v407
        %v440 = vunpack.c.l.b16 %v408
        %v441 = vunpack.c.l.b16 %v409
        %v442 = vunpack.c.l.b16 %v410
        %v443 = vunpack.c.l.b16 %v411
        %v444 = vunpack.c.l.b16 %v412
        %v445 = vunpack.c.l.b16 %v413
        %v446 = vpack.c.b16 %v431, %v430
        %v447 = vpack.c.b16 %v433, %v432
        %v448 = vpack.c.b16 %v435, %v434
        %v449 = vpack.c.b16 %v437, %v436
        %v450 = vpack.c.b16 %v439, %v438
        %v451 = vpack.c.b16 %v441, %v440
        %v452 = vpack.c.b16 %v443, %v442
        %v453 = vpack.c.b16 %v445, %v444
        %462 = vmatprep.subr.bf16.mxu0 0
        %463 = vmatpush1.bf16.msra.mxu0 %v390
        %464 = vmatprep.subr.bf16.mxu0 0
        %465 = vmatpush1.bf16.msra.mxu0 %v391
        %466 = vmatprep.subr.bf16.mxu0 0
        %467 = vmatpush1.bf16.msra.mxu0 %v392
        %468 = vmatprep.subr.bf16.mxu0 0
        %469 = vmatpush1.bf16.msra.mxu0 %v393
        %470 = vmatprep.subr.bf16.mxu0 0
        %471 = vmatpush1.bf16.msra.mxu0 %v394
        %472 = vmatprep.subr.bf16.mxu0 0
        %473 = vmatpush1.bf16.msra.mxu0 %v395
        %474 = vmatprep.subr.bf16.mxu0 0
        %475 = vmatpush1.bf16.msra.mxu0 %v396
        %476 = vmatprep.subr.bf16.mxu0 0
        %477 = vmatpush1.bf16.msra.mxu0 %v397
        %478 = vmatprep.subr.bf16.mxu0 0
        %479 = vmatpush1.bf16.msra.mxu0 0
        %480 = vmatprep.subr.bf16.mxu0 0
        %481 = vmatpush1.bf16.msra.mxu0 0
        %482 = vmatprep.subr.bf16.mxu0 0
        %483 = vmatpush1.bf16.msra.mxu0 0
        %484 = vmatprep.subr.bf16.mxu0 0
        %485 = vmatpush1.bf16.msra.mxu0 0
        %486 = vmatprep.subr.bf16.mxu0 0
        %487 = vmatpush1.bf16.msra.mxu0 0
        %488 = vmatprep.subr.bf16.mxu0 0
        %489 = vmatpush1.bf16.msra.mxu0 0
        %490 = vmatprep.subr.bf16.mxu0 0
        %491 = vmatpush1.bf16.msra.mxu0 0
        %492 = vmatprep.subr.bf16.mxu0 0
        %493 = vmatpush1.bf16.msra.mxu0 0
        %494 = vmatprep.mubr.bf16.mxu0 0
        %495 = vmatmul.mubr.bf16.gmra.mrb[0].mxu0 %v446
        %v496 = vpop.f32.mrb[0].mxu0
        %v497 = vadd.f32 0.0, %v496
        %v498 = vpop.f32.mrb[0].mxu0
        %v499 = vpop.f32.mrb[0].mxu0
        %v500 = vadd.f32 0.0, %v499
        %v501 = vpop.f32.mrb[0].mxu0
        %502 = vmatprep.mubr.bf16.mxu0 0
        %503 = vmatmul.mubr.bf16.gmra.mrb[0].mxu0 %v447
        %v504 = vpop.f32.mrb[0].mxu0
        %v505 = vadd.f32 0.0, %v504
        %v506 = vpop.f32.mrb[0].mxu0
        %v507 = vpop.f32.mrb[0].mxu0
        %v508 = vadd.f32 0.0, %v507
        %v509 = vpop.f32.mrb[0].mxu0
        %510 = vmatprep.mubr.bf16.mxu0 0
        %511 = vmatmul.mubr.bf16.gmra.mrb[0].mxu0 %v448
        %v512 = vpop.f32.mrb[0].mxu0
        %v513 = vadd.f32 0.0, %v512
        %v514 = vpop.f32.mrb[0].mxu0
        %v515 = vpop.f32.mrb[0].mxu0
        %v516 = vadd.f32 0.0, %v515
        %v517 = vpop.f32.mrb[0].mxu0
        %518 = vmatprep.mubr.bf16.mxu0 0
        %519 = vmatmul.mubr.bf16.gmra.mrb[0].mxu0 %v449
        %v520 = vpop.f32.mrb[0].mxu0
        %v521 = vadd.f32 0.0, %v520
        %v522 = vpop.f32.mrb[0].mxu0
        %v523 = vpop.f32.mrb[0].mxu0
        %v524 = vadd.f32 0.0, %v523
        %v525 = vpop.f32.mrb[0].mxu0
        %526 = vmatprep.mubr.bf16.mxu0 0
        %527 = vmatmul.mubr.bf16.gmra.mrb[0].mxu0 %v450
        %v528 = vpop.f32.mrb[0].mxu0
        %v529 = vadd.f32 0.0, %v528
        %v530 = vpop.f32.mrb[0].mxu0
        %v531 = vpop.f32.mrb[0].mxu0
        %v532 = vadd.f32 0.0, %v531
        %v533 = vpop.f32.mrb[0].mxu0
        %534 = vmatprep.mubr.bf16.mxu0 0
        %535 = vmatmul.mubr.bf16.gmra.mrb[0].mxu0 %v451
        %v536 = vpop.f32.mrb[0].mxu0
        %v537 = vadd.f32 0.0, %v536
        %v538 = vpop.f32.mrb[0].mxu0
        %v539 = vpop.f32.mrb[0].mxu0
        %v540 = vadd.f32 0.0, %v539
        %v541 = vpop.f32.mrb[0].mxu0
        %542 = vmatprep.mubr.bf16.mxu0 0
        %543 = vmatmul.mubr.bf16.gmra.mrb[0].mxu0 %v452
        %v544 = vpop.f32.mrb[0].mxu0
        %v545 = vadd.f32 0.0, %v544
        %v546 = vpop.f32.mrb[0].mxu0
        %v547 = vpop.f32.mrb[0].mxu0
        %v548 = vadd.f32 0.0, %v547
        %v549 = vpop.f32.mrb[0].mxu0
        %550 = vmatprep.mubr.bf16.mxu0 0
        %551 = vmatmul.mubr.bf16.gmra.mrb[0].mxu0 %v453
        %v552 = vpop.f32.mrb[0].mxu0
        %v553 = vadd.f32 0.0, %v552
        %v554 = vpop.f32.mrb[0].mxu0
        %v555 = vpop.f32.mrb[0].mxu0
        %v556 = vadd.f32 0.0, %v555
        %v557 = vpop.f32.mrb[0].mxu0
        %558 = vdwg.mxu0
        %v559 = vld [vmem:[%s290] sm:$0xf]
        %v560 = vld [vmem:[%s290 + $0x4] sm:$0xf]
        %v561 = vld [vmem:[%s290 + $0x8] sm:$0xf]
        %v562 = vld [vmem:[%s290 + $0xc] sm:$0xf]
        %v563 = vld [vmem:[%s290 + $0x10] sm:$0xf]
        %v564 = vld [vmem:[%s290 + $0x14] sm:$0xf]
        %v565 = vld [vmem:[%s290 + $0x18] sm:$0xf]
        %v566 = vld [vmem:[%s290 + $0x1c] sm:$0xf]
        %v567 = vld [vmem:[%s290 + $0x20] sm:$0xf]
        %v568 = vld [vmem:[%s290 + $0x24] sm:$0xf]
        %v569 = vld [vmem:[%s290 + $0x28] sm:$0xf]
        %v570 = vld [vmem:[%s290 + $0x2c] sm:$0xf]
        %v571 = vld [vmem:[%s290 + $0x30] sm:$0xf]
        %v572 = vld [vmem:[%s290 + $0x34] sm:$0xf]
        %v573 = vld [vmem:[%s290 + $0x38] sm:$0xf]
        %v574 = vld [vmem:[%s290 + $0x3c] sm:$0xf]
        %v575 = vpack.c.bf16 %v500, %v497
        %v576 = vpack.c.bf16 %v508, %v505
        %v577 = vpack.c.bf16 %v516, %v513
        %v578 = vpack.c.bf16 %v524, %v521
        %v579 = vpack.c.bf16 %v532, %v529
        %v580 = vpack.c.bf16 %v540, %v537
        %v581 = vpack.c.bf16 %v548, %v545
        %v582 = vpack.c.bf16 %v556, %v553
        %v583 = vld [vmem:[%s299] sm:$0xf]
        %v584 = vld [vmem:[%s299 + $0x4] sm:$0xf]
        %v585 = vld [vmem:[%s299 + $0x8] sm:$0xf]
        %v586 = vld [vmem:[%s299 + $0xc] sm:$0xf]
        %v587 = vld [vmem:[%s299 + $0x10] sm:$0xf]
        %v588 = vld [vmem:[%s299 + $0x14] sm:$0xf]
        %v589 = vld [vmem:[%s299 + $0x18] sm:$0xf]
        %v590 = vld [vmem:[%s299 + $0x1c] sm:$0xf]
        %v591 = vld [vmem:[%s299 + $0x20] sm:$0xf]
        %v592 = vld [vmem:[%s299 + $0x24] sm:$0xf]
        %v593 = vld [vmem:[%s299 + $0x28] sm:$0xf]
        %v594 = vld [vmem:[%s299 + $0x2c] sm:$0xf]
        %v595 = vld [vmem:[%s299 + $0x30] sm:$0xf]
        %v596 = vld [vmem:[%s299 + $0x34] sm:$0xf]
        %v597 = vld [vmem:[%s299 + $0x38] sm:$0xf]
        %v598 = vld [vmem:[%s299 + $0x3c] sm:$0xf]
        %v615 = vunpack.c.l.b16 %v583
        %v616 = vunpack.c.l.b16 %v584
        %v617 = vunpack.c.l.b16 %v585
        %v618 = vunpack.c.l.b16 %v586
        %v619 = vunpack.c.l.b16 %v587
        %v620 = vunpack.c.l.b16 %v588
        %v621 = vunpack.c.l.b16 %v589
        %v622 = vunpack.c.l.b16 %v590
        %v623 = vunpack.c.l.b16 %v591
        %v624 = vunpack.c.l.b16 %v592
        %v625 = vunpack.c.l.b16 %v593
        %v626 = vunpack.c.l.b16 %v594
        %v627 = vunpack.c.l.b16 %v595
        %v628 = vunpack.c.l.b16 %v596
        %v629 = vunpack.c.l.b16 %v597
        %v630 = vunpack.c.l.b16 %v598
        %v631 = vpack.c.b16 %v616, %v615
        %v632 = vpack.c.b16 %v618, %v617
        %v633 = vpack.c.b16 %v620, %v619
        %v634 = vpack.c.b16 %v622, %v621
        %v635 = vpack.c.b16 %v624, %v623
        %v636 = vpack.c.b16 %v626, %v625
        %v637 = vpack.c.b16 %v628, %v627
        %v638 = vpack.c.b16 %v630, %v629
        %647 = vmatprep.subr.bf16.mxu0 0
        %648 = vmatpush1.bf16.msra.mxu0 %v631
        %649 = vmatprep.subr.bf16.mxu0 0
        %650 = vmatpush1.bf16.msra.mxu0 %v632
        %651 = vmatprep.subr.bf16.mxu0 0
        %652 = vmatpush1.bf16.msra.mxu0 %v633
        %653 = vmatprep.subr.bf16.mxu0 0
        %654 = vmatpush1.bf16.msra.mxu0 %v634
        %655 = vmatprep.subr.bf16.mxu0 0
        %656 = vmatpush1.bf16.msra.mxu0 %v635
        %657 = vmatprep.subr.bf16.mxu0 0
        %658 = vmatpush1.bf16.msra.mxu0 %v636
        %659 = vmatprep.subr.bf16.mxu0 0
        %660 = vmatpush1.bf16.msra.mxu0 %v637
        %661 = vmatprep.subr.bf16.mxu0 0
        %662 = vmatpush1.bf16.msra.mxu0 %v638
        %663 = vmatprep.subr.bf16.mxu0 0
        %664 = vmatpush1.bf16.msra.mxu0 0
        %665 = vmatprep.subr.bf16.mxu0 0
        %666 = vmatpush1.bf16.msra.mxu0 0
        %667 = vmatprep.subr.bf16.mxu0 0
        %668 = vmatpush1.bf16.msra.mxu0 0
        %669 = vmatprep.subr.bf16.mxu0 0
        %670 = vmatpush1.bf16.msra.mxu0 0
        %671 = vmatprep.subr.bf16.mxu0 0
        %672 = vmatpush1.bf16.msra.mxu0 0
        %673 = vmatprep.subr.bf16.mxu0 0
        %674 = vmatpush1.bf16.msra.mxu0 0
        %675 = vmatprep.subr.bf16.mxu0 0
        %676 = vmatpush1.bf16.msra.mxu0 0
        %677 = vmatprep.subr.bf16.mxu0 0
        %678 = vmatpush1.bf16.msra.mxu0 0
        %679 = vmatprep.mubr.bf16.mxu0 0
        %680 = vmatmul.mubr.bf16.gmra.mrb[0].mxu0 %v575
        %v681 = vpop.f32.mrb[0].mxu0
        %v682 = vadd.f32 0.0, %v681
        %v683 = vpop.f32.mrb[0].mxu0
        %v684 = vpop.f32.mrb[0].mxu0
        %v685 = vadd.f32 0.0, %v684
        %v686 = vpop.f32.mrb[0].mxu0
        %687 = vmatprep.mubr.bf16.mxu0 0
        %688 = vmatmul.mubr.bf16.gmra.mrb[0].mxu0 %v576
        %v689 = vpop.f32.mrb[0].mxu0
        %v690 = vadd.f32 0.0, %v689
        %v691 = vpop.f32.mrb[0].mxu0
        %v692 = vpop.f32.mrb[0].mxu0
        %v693 = vadd.f32 0.0, %v692
        %v694 = vpop.f32.mrb[0].mxu0
        %695 = vmatprep.mubr.bf16.mxu0 0
        %696 = vmatmul.mubr.bf16.gmra.mrb[0].mxu0 %v577
        %v697 = vpop.f32.mrb[0].mxu0
        %v698 = vadd.f32 0.0, %v697
        %v699 = vpop.f32.mrb[0].mxu0
        %v700 = vpop.f32.mrb[0].mxu0
        %v701 = vadd.f32 0.0, %v700
        %v702 = vpop.f32.mrb[0].mxu0
        %703 = vmatprep.mubr.bf16.mxu0 0
        %704 = vmatmul.mubr.bf16.gmra.mrb[0].mxu0 %v578
        %v705 = vpop.f32.mrb[0].mxu0
        %v706 = vadd.f32 0.0, %v705
        %v707 = vpop.f32.mrb[0].mxu0
        %v708 = vpop.f32.mrb[0].mxu0
        %v709 = vadd.f32 0.0, %v708
        %v710 = vpop.f32.mrb[0].mxu0
        %711 = vmatprep.mubr.bf16.mxu0 0
        %712 = vmatmul.mubr.bf16.gmra.mrb[0].mxu0 %v579
        %v713 = vpop.f32.mrb[0].mxu0
        %v714 = vadd.f32 0.0, %v713
        %v715 = vpop.f32.mrb[0].mxu0
        %v716 = vpop.f32.mrb[0].mxu0
        %v717 = vadd.f32 0.0, %v716
        %v718 = vpop.f32.mrb[0].mxu0
        %719 = vmatprep.mubr.bf16.mxu0 0
        %720 = vmatmul.mubr.bf16.gmra.mrb[0].mxu0 %v580
        %v721 = vpop.f32.mrb[0].mxu0
        %v722 = vadd.f32 0.0, %v721
        %v723 = vpop.f32.mrb[0].mxu0
        %v724 = vpop.f32.mrb[0].mxu0
        %v725 = vadd.f32 0.0, %v724
        %v726 = vpop.f32.mrb[0].mxu0
        %727 = vmatprep.mubr.bf16.mxu0 0
        %728 = vmatmul.mubr.bf16.gmra.mrb[0].mxu0 %v581
        %v729 = vpop.f32.mrb[0].mxu0
        %v730 = vadd.f32 0.0, %v729
        %v731 = vpop.f32.mrb[0].mxu0
        %v732 = vpop.f32.mrb[0].mxu0
        %v733 = vadd.f32 0.0, %v732
        %v734 = vpop.f32.mrb[0].mxu0
        %735 = vmatprep.mubr.bf16.mxu0 0
        %736 = vmatmul.mubr.bf16.gmra.mrb[0].mxu0 %v582
        %v737 = vpop.f32.mrb[0].mxu0
        %v738 = vadd.f32 0.0, %v737
        %v739 = vpop.f32.mrb[0].mxu0
        %v740 = vpop.f32.mrb[0].mxu0
        %v741 = vadd.f32 0.0, %v740
        %v742 = vpop.f32.mrb[0].mxu0
        %743 = vdwg.mxu0
        %v760 = vunpack.c.l.b16 %v559
        %v761 = vunpack.c.l.b16 %v560
        %v762 = vunpack.c.l.b16 %v561
        %v763 = vunpack.c.l.b16 %v562
        %v764 = vunpack.c.l.b16 %v563
        %v765 = vunpack.c.l.b16 %v564
        %v766 = vunpack.c.l.b16 %v565
        %v767 = vunpack.c.l.b16 %v566
        %v768 = vunpack.c.l.b16 %v567
        %v769 = vunpack.c.l.b16 %v568
        %v770 = vunpack.c.l.b16 %v569
        %v771 = vunpack.c.l.b16 %v570
        %v772 = vunpack.c.l.b16 %v571
        %v773 = vunpack.c.l.b16 %v572
        %v774 = vunpack.c.l.b16 %v573
        %v775 = vunpack.c.l.b16 %v574
        %v776 = vpack.c.b16 %v761, %v760
        %v777 = vpack.c.b16 %v763, %v762
        %v778 = vpack.c.b16 %v765, %v764
        %v779 = vpack.c.b16 %v767, %v766
        %v780 = vpack.c.b16 %v769, %v768
        %v781 = vpack.c.b16 %v771, %v770
        %v782 = vpack.c.b16 %v773, %v772
        %v783 = vpack.c.b16 %v775, %v774
        %792 = vmatprep.subr.bf16.mxu0 0
        %793 = vmatpush1.bf16.msra.mxu0 %v776
        %794 = vmatprep.subr.bf16.mxu0 0
        %795 = vmatpush1.bf16.msra.mxu0 %v777
        %796 = vmatprep.subr.bf16.mxu0 0
        %797 = vmatpush1.bf16.msra.mxu0 %v778
        %798 = vmatprep.subr.bf16.mxu0 0
        %799 = vmatpush1.bf16.msra.mxu0 %v779
        %800 = vmatprep.subr.bf16.mxu0 0
        %801 = vmatpush1.bf16.msra.mxu0 %v780
        %802 = vmatprep.subr.bf16.mxu0 0
        %803 = vmatpush1.bf16.msra.mxu0 %v781
        %804 = vmatprep.subr.bf16.mxu0 0
        %805 = vmatpush1.bf16.msra.mxu0 %v782
        %806 = vmatprep.subr.bf16.mxu0 0
        %807 = vmatpush1.bf16.msra.mxu0 %v783
        %808 = vmatprep.subr.bf16.mxu0 0
        %809 = vmatpush1.bf16.msra.mxu0 0
        %810 = vmatprep.subr.bf16.mxu0 0
        %811 = vmatpush1.bf16.msra.mxu0 0
        %812 = vmatprep.subr.bf16.mxu0 0
        %813 = vmatpush1.bf16.msra.mxu0 0
        %814 = vmatprep.subr.bf16.mxu0 0
        %815 = vmatpush1.bf16.msra.mxu0 0
        %816 = vmatprep.subr.bf16.mxu0 0
        %817 = vmatpush1.bf16.msra.mxu0 0
        %818 = vmatprep.subr.bf16.mxu0 0
        %819 = vmatpush1.bf16.msra.mxu0 0
        %820 = vmatprep.subr.bf16.mxu0 0
        %821 = vmatpush1.bf16.msra.mxu0 0
        %822 = vmatprep.subr.bf16.mxu0 0
        %823 = vmatpush1.bf16.msra.mxu0 0
        %824 = vmatprep.mubr.bf16.mxu0 0
        %825 = vmatmul.mubr.bf16.gmra.mrb[0].mxu0 %v390
        %v826 = vpop.f32.mrb[0].mxu0
        %v827 = vadd.f32 %v682, %v826
        %v828 = vpop.f32.mrb[0].mxu0
        %v829 = vpop.f32.mrb[0].mxu0
        %v830 = vadd.f32 %v685, %v829
        %v831 = vpop.f32.mrb[0].mxu0
        %832 = vmatprep.mubr.bf16.mxu0 0
        %833 = vmatmul.mubr.bf16.gmra.mrb[0].mxu0 %v391
        %v834 = vpop.f32.mrb[0].mxu0
        %v835 = vadd.f32 %v690, %v834
        %v836 = vpop.f32.mrb[0].mxu0
        %v837 = vpop.f32.mrb[0].mxu0
        %v838 = vadd.f32 %v693, %v837
        %v839 = vpop.f32.mrb[0].mxu0
        %840 = vmatprep.mubr.bf16.mxu0 0
        %841 = vmatmul.mubr.bf16.gmra.mrb[0].mxu0 %v392
        %v842 = vpop.f32.mrb[0].mxu0
        %v843 = vadd.f32 %v698, %v842
        %v844 = vpop.f32.mrb[0].mxu0
        %v845 = vpop.f32.mrb[0].mxu0
        %v846 = vadd.f32 %v701, %v845
        %v847 = vpop.f32.mrb[0].mxu0
        %848 = vmatprep.mubr.bf16.mxu0 0
        %849 = vmatmul.mubr.bf16.gmra.mrb[0].mxu0 %v393
        %v850 = vpop.f32.mrb[0].mxu0
        %v851 = vadd.f32 %v706, %v850
        %v852 = vpop.f32.mrb[0].mxu0
        %v853 = vpop.f32.mrb[0].mxu0
        %v854 = vadd.f32 %v709, %v853
        %v855 = vpop.f32.mrb[0].mxu0
        %856 = vmatprep.mubr.bf16.mxu0 0
        %857 = vmatmul.mubr.bf16.gmra.mrb[0].mxu0 %v394
        %v858 = vpop.f32.mrb[0].mxu0
        %v859 = vadd.f32 %v714, %v858
        %v860 = vpop.f32.mrb[0].mxu0
        %v861 = vpop.f32.mrb[0].mxu0
        %v862 = vadd.f32 %v717, %v861
        %v863 = vpop.f32.mrb[0].mxu0
        %864 = vmatprep.mubr.bf16.mxu0 0
        %865 = vmatmul.mubr.bf16.gmra.mrb[0].mxu0 %v395
        %v866 = vpop.f32.mrb[0].mxu0
        %v867 = vadd.f32 %v722, %v866
        %v868 = vpop.f32.mrb[0].mxu0
        %v869 = vpop.f32.mrb[0].mxu0
        %v870 = vadd.f32 %v725, %v869
        %v871 = vpop.f32.mrb[0].mxu0
        %872 = vmatprep.mubr.bf16.mxu0 0
        %873 = vmatmul.mubr.bf16.gmra.mrb[0].mxu0 %v396
        %v874 = vpop.f32.mrb[0].mxu0
        %v875 = vadd.f32 %v730, %v874
        %v876 = vpop.f32.mrb[0].mxu0
        %v877 = vpop.f32.mrb[0].mxu0
        %v878 = vadd.f32 %v733, %v877
        %v879 = vpop.f32.mrb[0].mxu0
        %880 = vmatprep.mubr.bf16.mxu0 0
        %881 = vmatmul.mubr.bf16.gmra.mrb[0].mxu0 %v397
        %v882 = vpop.f32.mrb[0].mxu0
        %v883 = vadd.f32 %v738, %v882
        %v884 = vpop.f32.mrb[0].mxu0
        %v885 = vpop.f32.mrb[0].mxu0
        %v886 = vadd.f32 %v741, %v885
        %v887 = vpop.f32.mrb[0].mxu0
        %888 = vdwg.mxu0
        %v889 = vld [vmem:[%s336] sm:$0x1]
        %v891 = vlaneseq
        %v892 = vshrl.u32 %v891, 7
        %v893 = vsub.s32 0, %v892
        %v894 = vrot.slane %v889, %v893
        %v896 = vadd.f32 %v827, %v894
        %v897 = vadd.f32 %v830, %v894
        %v898 = vadd.f32 %v835, %v894
        %v899 = vadd.f32 %v838, %v894
        %v900 = vadd.f32 %v843, %v894
        %v901 = vadd.f32 %v846, %v894
        %v902 = vadd.f32 %v851, %v894
        %v903 = vadd.f32 %v854, %v894
        %v904 = vadd.f32 %v859, %v894
        %v905 = vadd.f32 %v862, %v894
        %v906 = vadd.f32 %v867, %v894
        %v907 = vadd.f32 %v870, %v894
        %v908 = vadd.f32 %v875, %v894
        %v909 = vadd.f32 %v878, %v894
        %v910 = vadd.f32 %v883, %v894
        %v911 = vadd.f32 %v886, %v894
        %p912 = scmp.ne.s32.totalorder %s24, 2
        // Predicated region
        $region61: #{tpu_custom_call.1} parent=39 // pred_check
          %p913 = pneg %p912
        $region62: #{tpu_custom_call.1} parent=39 // pred_check_branch
          %915 = sbr.rel (%p913) target = $region64
        $region63: #{tpu_custom_call.1} parent=39 // pred_region
          %v916 = vmax.f32 %v896, 0.0
          %v917 = vmax.f32 %v897, 0.0
          %v918 = vmax.f32 %v898, 0.0
          %v919 = vmax.f32 %v899, 0.0
          %v920 = vmax.f32 %v900, 0.0
          %v921 = vmax.f32 %v901, 0.0
          %v922 = vmax.f32 %v902, 0.0
          %v923 = vmax.f32 %v903, 0.0
          %v924 = vmax.f32 %v904, 0.0
          %v925 = vmax.f32 %v905, 0.0
          %v926 = vmax.f32 %v906, 0.0
          %v927 = vmax.f32 %v907, 0.0
          %v928 = vmax.f32 %v908, 0.0
          %v929 = vmax.f32 %v909, 0.0
          %v930 = vmax.f32 %v910, 0.0
          %v931 = vmax.f32 %v911, 0.0
          %932 = vst [vmem:[#allocation2] sm:$0xff] %v916
          %933 = vst [vmem:[#allocation2 + $0x8] sm:$0xff] %v917
          %934 = vst [vmem:[#allocation2 + $0x10] sm:$0xff] %v918
          %935 = vst [vmem:[#allocation2 + $0x18] sm:$0xff] %v919
          %936 = vst [vmem:[#allocation2 + $0x20] sm:$0xff] %v920
          %937 = vst [vmem:[#allocation2 + $0x28] sm:$0xff] %v921
          %938 = vst [vmem:[#allocation2 + $0x30] sm:$0xff] %v922
          %939 = vst [vmem:[#allocation2 + $0x38] sm:$0xff] %v923
          %940 = vst [vmem:[#allocation2 + $0x40] sm:$0xff] %v924
          %941 = vst [vmem:[#allocation2 + $0x48] sm:$0xff] %v925
          %942 = vst [vmem:[#allocation2 + $0x50] sm:$0xff] %v926
          %943 = vst [vmem:[#allocation2 + $0x58] sm:$0xff] %v927
          %944 = vst [vmem:[#allocation2 + $0x60] sm:$0xff] %v928
          %945 = vst [vmem:[#allocation2 + $0x68] sm:$0xff] %v929
          %946 = vst [vmem:[#allocation2 + $0x70] sm:$0xff] %v930
          %947 = vst [vmem:[#allocation2 + $0x78] sm:$0xff] %v931
        $region64: #{tpu_custom_call.1} parent=39 // pred_fallthru
          _
        %p948 = scmp.eq.s32.totalorder %s24, 2
        // Predicated region
        $region65: #{tpu_custom_call.1} parent=39 // pred_check
          %p949 = pneg %p948
        $region66: #{tpu_custom_call.1} parent=39 // pred_check_branch
          %951 = sbr.rel (%p949) target = $region68
        $region67: #{tpu_custom_call.1} parent=39 // pred_region
          %952 = vst [vmem:[#allocation11] sm:$0xff] %v896
          %953 = vst [vmem:[#allocation11 + $0x8] sm:$0xff] %v897
          %954 = vst [vmem:[#allocation11 + $0x10] sm:$0xff] %v898
          %955 = vst [vmem:[#allocation11 + $0x18] sm:$0xff] %v899
          %956 = vst [vmem:[#allocation11 + $0x20] sm:$0xff] %v900
          %957 = vst [vmem:[#allocation11 + $0x28] sm:$0xff] %v901
          %958 = vst [vmem:[#allocation11 + $0x30] sm:$0xff] %v902
          %959 = vst [vmem:[#allocation11 + $0x38] sm:$0xff] %v903
          %960 = vst [vmem:[#allocation11 + $0x40] sm:$0xff] %v904
          %961 = vst [vmem:[#allocation11 + $0x48] sm:$0xff] %v905
          %962 = vst [vmem:[#allocation11 + $0x50] sm:$0xff] %v906
          %963 = vst [vmem:[#allocation11 + $0x58] sm:$0xff] %v907
          %964 = vst [vmem:[#allocation11 + $0x60] sm:$0xff] %v908
          %965 = vst [vmem:[#allocation11 + $0x68] sm:$0xff] %v909
          %966 = vst [vmem:[#allocation11 + $0x70] sm:$0xff] %v910
          %967 = vst [vmem:[#allocation11 + $0x78] sm:$0xff] %v911
        $region68: #{tpu_custom_call.1} parent=39 // pred_fallthru
          _
        // Predicated region
        $region69: #{tpu_custom_call.1} parent=39 // pred_check
          %p968 = pneg %p162
        $region70: #{tpu_custom_call.1} parent=39 // pred_check_branch
          %970 = sbr.rel (%p968) target = $region72
        $region71: #{tpu_custom_call.1} parent=39 // pred_region
          %s972 = ssub.s32 2048, 2048
          %973 = vsyncadd [#allocation5], %s972
          %s974 = sshll.u32 [#allocation11], 4
          %s975 = int_to_ptr.vmem [resolvable:$true] %s974
          %980 = dma.vmem_to_hbm [thread:$0]  %s975, 2048, %s5, [#allocation5], 128, 128, 8
        $region72: #{tpu_custom_call.1} parent=39 // pred_fallthru
          _
        // Predicated region
        $region73: #{tpu_custom_call.1} parent=39 // pred_check
          %p981 = pneg %p162
        $region74: #{tpu_custom_call.1} parent=39 // pred_check_branch
          %983 = sbr.rel (%p981) target = $region76
        $region75: #{tpu_custom_call.1} parent=39 // pred_region
          %984 = dma.done [#allocation5], 2048
        $region76: #{tpu_custom_call.1} parent=39 // pred_fallthru
          _
      $region40: #{tpu_custom_call.1} parent=5 // pred_fallthru
        _
      %p985 = scmp.le.s32.totalorder 2, %s19
      // Predicated region
      $region77: #{tpu_custom_call.1} parent=5 // pred_check
        %p986 = pneg %p985
      $region78: #{tpu_custom_call.1} parent=5 // pred_check_branch
        %988 = sbr.rel (%p986) target = $region80
      $region79: #{tpu_custom_call.1} parent=5 // pred_region
        %s989 = ssub.s32 %s19, 2
      $region80: #{tpu_custom_call.1} parent=5 // pred_fallthru
        _
    $region6: #{tpu_custom_call.1} parent=1 // loop_footer
      %s23 = sadd.s32 1, %s19
    $region7: #{tpu_custom_call.1} parent=1 // loop_footer_branch
      %18 = sbr.rel target = $region3
    $region8: #{tpu_custom_call.1} parent=1 // loop_exit
      _
    %990 = vsyncpa [#allocation4], 1
    %s991 = scalar_lea.sflag [#allocation4], 1
    %992 = vsyncpa %s991, 1
    %993 = vsyncpa [#allocation7], 1
    %s994 = scalar_lea.sflag [#allocation7], 1
    %995 = vsyncpa %s994, 1
    %996 = vsyncpa [#allocation10], 1
    %s997 = scalar_lea.sflag [#allocation10], 1
    %998 = vsyncpa %s997, 1
    %999 = vsyncpa [#allocation5], 1
    %s1000 = scalar_lea.sflag [#allocation5], 1
    %1001 = vsyncpa %s1000, 1

</llo_original>
